<compile_context>
chip_gen: v7x
topology: tpu7x:2x2x1
jax: 0.10.0
libtpu: 0.0.40
codegen_flags: <defaults>
</compile_context>

<pallas_src>
import jax
import jax.numpy as jnp
from jax.experimental import pallas as pl
from jax.experimental.pallas import tpu as pltpu


# ----------------------------------------------------------------------------
# Fused kernel.
#   per grid step: BT batches of
#     2x (1x1 conv + folded BN + ReLU)  ->  channel sum/max  ->
#     fused 3x3-conv matmul + sigmoid   ->  fused x4 upsample of [high_f; kf]
#     ->  x2 upsample of mid_f          ->  alpha fusion + Purity + residual
# ----------------------------------------------------------------------------
def _cfc_kernel(alpha_ref,                       # SMEM (3,)  = (1+a1, a2, a3)
                low_ref, mid_ref, high_ref,      # (BT,16,256) (BT,32,64) (BT,64,16)
                w3_ref, b3_ref, w4_ref, b4_ref,  # (16,64)(16,1)(16,32)(16,1)
                cc_ref,                          # (2*HWh, HWh) stacked Toeplitz
                u4_ref, u2_ref,                  # (16,256) (64,256) replication
                o_ref):                          # (BT,16,256)
    a1p = alpha_ref[0]
    a2 = alpha_ref[1]
    a3 = alpha_ref[2]

    w3 = w3_ref[...]
    b3 = b3_ref[...]
    w4 = w4_ref[...]
    b4 = b4_ref[...]
    cc = cc_ref[...]
    u4 = u4_ref[...]
    u2 = u2_ref[...]

    bt = low_ref.shape[0]
    # Statically unrolled per-batch loop: gives the LLO scheduler BT
    # independent MXU chains to interleave (hides MXU result-FIFO latency).
    for b in range(bt):
        low = low_ref[b]        # (16, 256)  = (C, H*W) at low resolution
        mid = mid_ref[b]        # (32, 64)
        high = high_ref[b]      # (64, 16)

        # uplayer3 / uplayer4 : 1x1 conv + folded BatchNorm + ReLU
        #   (Cout, Cin) @ (Cin, H*W)  -- NCHW-native, no transpose needed.
        high_f = jnp.maximum(
            jnp.dot(w3, high, preferred_element_type=jnp.float32) + b3, 0.0)  # (16,16)
        mid_f = jnp.maximum(
            jnp.dot(w4, mid, preferred_element_type=jnp.float32) + b4, 0.0)   # (16,64)

        # channel sum / max of high_f (channel axis = sublanes, XLU).  The
        # 1/Cout of the mean is folded into the top half of cc.
        s = jnp.sum(high_f, axis=0, keepdims=True)          # (1, HWh)
        mx = jnp.max(high_f, axis=0, keepdims=True)         # (1, HWh)

        # fused 3x3 conv (2->1 ch, pad=1) + sigmoid: ONE matmul against the
        # stacked [ca/Cout ; cm] Toeplitz matrix, sigmoid on the EUP.
        kf = jax.nn.sigmoid(
            jnp.dot(jnp.concatenate([s, mx], axis=1), cc,
                    preferred_element_type=jnp.float32))     # (1, HWh)

        # fused nearest x4 upsample of high_f AND kf: append kf as one extra
        # sublane row, single matmul against the 0/1 replication matrix.
        hk = jnp.concatenate([high_f, kf], axis=0)            # (Cout+1, HWh)
        hk_up = jnp.dot(hk, u4, preferred_element_type=jnp.float32)  # (Cout+1, HWl)
        h2l = hk_up[:-1, :]                                    # (Cout, HWl)
        kf_up = hk_up[-1:, :]                                  # (1,    HWl)

        # nearest x2 upsample of mid_f.
        m2l = jnp.dot(mid_f, u2, preferred_element_type=jnp.float32)  # (Cout, HWl)

        # HSNR = (1+a1)*low + a2*h2l + a3*m2l + m2l * kf_up
        #      = a1p*low + a2*h2l + (a3 + kf_up) * m2l
        # (nearest-neighbor interpolation with integer scales distributes
        #  over the product, so Purity can be fused this way.)
        o_ref[b] = a1p * low + a2 * h2l + (a3 + kf_up) * m2l


# ----------------------------------------------------------------------------
# Parameter preprocessing (wrapper side, done once)
# ----------------------------------------------------------------------------
def _fold_bn(w_oi, b, gamma, beta, mean, var, eps=1e-5):
    """Fold eval-mode BatchNorm into the preceding 1x1 conv (keeps OI layout)."""
    scale = gamma / jnp.sqrt(var + eps)
    w_eff = w_oi * scale[:, None]                       # (Cout, Cin)
    b_eff = ((b - mean) * scale + beta)[:, None]        # (Cout, 1)
    return w_eff.astype(jnp.float32), b_eff.astype(jnp.float32)


def _conv3x3_as_matrix(w33, h, w):
    """(h*w, h*w) matrix M with  x_flat @ M == conv2d(x, w33, pad=1)_flat."""
    qi = jnp.arange(h)[:, None, None, None]
    qj = jnp.arange(w)[None, :, None, None]
    pi = jnp.arange(h)[None, None, :, None]
    pj = jnp.arange(w)[None, None, None, :]
    di = qi - pi + 1
    dj = qj - pj + 1
    valid = (di >= 0) & (di <= 2) & (dj >= 0) & (dj <= 2)
    wv = w33[jnp.clip(di, 0, 2), jnp.clip(dj, 0, 2)]
    m = jnp.where(valid, wv, 0.0)
    return m.reshape(h * w, h * w).astype(jnp.float32)


def _nearest_up_matrix(h, w, k):
    """(h*w, h*k*w*k) 0/1 matrix:  x_flat @ U == nearest_upsample(x, k)_flat."""
    pi = jnp.arange(h * k)[:, None]
    pj = jnp.arange(w * k)[None, :]
    src = ((pi // k) * w + (pj // k)).reshape(-1)        # (h*k*w*k,)
    q = jnp.arange(h * w)[:, None]
    return (q == src[None, :]).astype(jnp.float32)


def _pick_block_batch(batch, max_bt=8):
    """Largest divisor of `batch` that keeps >=2 grid steps (v7x megacore) and
    caps the per-step working set (batch blocking amortizes the ~0.35us
    per-grid-step overhead)."""
    if batch <= 1:
        return 1
    cap = max(1, min(max_bt, batch // 2))
    for bt in range(cap, 0, -1):
        if batch % bt == 0:
            return bt
    return 1


# ----------------------------------------------------------------------------
# Public wrapper: NCHW in / NCHW out, single fused pallas_call
# ----------------------------------------------------------------------------
@jax.jit
def cfc_forward(params, low_nchw, mid_nchw, high_nchw):
    B, Cl, Hl, Wl = low_nchw.shape
    _, Cm, Hm, Wm = mid_nchw.shape
    _, Ch, Hh, Wh = high_nchw.shape
    Cout = params["w3"].shape[0]

    # free reshapes (NCHW is already contiguous in this order)
    low3 = low_nchw.reshape(B, Cl, Hl * Wl).astype(jnp.float32)
    mid3 = mid_nchw.reshape(B, Cm, Hm * Wm).astype(jnp.float32)
    high3 = high_nchw.reshape(B, Ch, Hh * Wh).astype(jnp.float32)

    w3, b3 = _fold_bn(params["w3"], params["b3"], params["bn3_gamma"],
                      params["bn3_beta"], params["bn3_mean"], params["bn3_var"])
    w4, b4 = _fold_bn(params["w4"], params["b4"], params["bn4_gamma"],
                      params["bn4_beta"], params["bn4_mean"], params["bn4_var"])

    # Stacked 3x3-conv Toeplitz matrix: kf = sigmoid([sum, max] @ cc)
    #   top half    = ca / Cout   (mean branch, 1/Cout folded in)
    #   bottom half = cm          (max branch)
    ca = _conv3x3_as_matrix(params["conv_w"][0, 0], Hh, Wh)      # (HhWh, HhWh)
    cm = _conv3x3_as_matrix(params["conv_w"][0, 1], Hh, Wh)
    cc = jnp.concatenate([ca / jnp.float32(Cout), cm], axis=0)   # (2*HhWh, HhWh)

    u4 = _nearest_up_matrix(Hh, Wh, Hl // Hh)                    # (HhWh, HlWl)
    u2 = _nearest_up_matrix(Hm, Wm, Hl // Hm)                    # (HmWm, HlWl)

    alphas = jnp.concatenate(
        [1.0 + params["a1"], params["a2"], params["a3"]]).astype(jnp.float32)

    HWl, HWm, HWh = Hl * Wl, Hm * Wm, Hh * Wh
    BT = _pick_block_batch(B)
    nsteps = B // BT

    out = pl.pallas_call(
        _cfc_kernel,
        out_shape=jax.ShapeDtypeStruct((B, Cout, HWl), jnp.float32),
        grid=(nsteps,),
        in_specs=[
            pl.BlockSpec(memory_space=pltpu.MemorySpace.SMEM),        # alphas
            pl.BlockSpec((BT, Cl, HWl), lambda i: (i, 0, 0)),         # low
            pl.BlockSpec((BT, Cm, HWm), lambda i: (i, 0, 0)),         # mid
            pl.BlockSpec((BT, Ch, HWh), lambda i: (i, 0, 0)),         # high
            pl.BlockSpec((Cout, Ch), lambda i: (0, 0)),               # w3
            pl.BlockSpec((Cout, 1), lambda i: (0, 0)),                # b3
            pl.BlockSpec((Cout, Cm), lambda i: (0, 0)),               # w4
            pl.BlockSpec((Cout, 1), lambda i: (0, 0)),                # b4
            pl.BlockSpec((2 * HWh, HWh), lambda i: (0, 0)),           # cc (conv)
            pl.BlockSpec((HWh, HWl), lambda i: (0, 0)),               # up x4
            pl.BlockSpec((HWm, HWl), lambda i: (0, 0)),               # up x2
        ],
        out_specs=pl.BlockSpec((BT, Cout, HWl), lambda i: (i, 0, 0)),
        compiler_params=pltpu.CompilerParams(
            dimension_semantics=("parallel",)),       # v7x: shard steps over TCs
    )(alphas, low3, mid3, high3, w3, b3, w4, b4, cc, u4, u2)

    return out.reshape(B, Cout, Hl, Wl)               # NCHW, free reshape


# ----------------------------------------------------------------------------
# Deterministic synthetic parameters
# ----------------------------------------------------------------------------
def init_params(key):
    ks = jax.random.split(key, 16)
    p = {}
    p["w3"] = 0.1 * jax.random.normal(ks[0], (16, 64), jnp.float32)   # OI (1x1)
    p["b3"] = 0.1 * jax.random.normal(ks[1], (16,), jnp.float32)
    p["bn3_gamma"] = 1.0 + 0.1 * jax.random.normal(ks[2], (16,), jnp.float32)
    p["bn3_beta"] = 0.1 * jax.random.normal(ks[3], (16,), jnp.float32)
    p["bn3_mean"] = 0.1 * jax.random.normal(ks[4], (16,), jnp.float32)
    p["bn3_var"] = 0.5 + jnp.abs(jax.random.normal(ks[5], (16,), jnp.float32))
    p["w4"] = 0.1 * jax.random.normal(ks[6], (16, 32), jnp.float32)   # OI (1x1)
    p["b4"] = 0.1 * jax.random.normal(ks[7], (16,), jnp.float32)
    p["bn4_gamma"] = 1.0 + 0.1 * jax.random.normal(ks[8], (16,), jnp.float32)
    p["bn4_beta"] = 0.1 * jax.random.normal(ks[9], (16,), jnp.float32)
    p["bn4_mean"] = 0.1 * jax.random.normal(ks[10], (16,), jnp.float32)
    p["bn4_var"] = 0.5 + jnp.abs(jax.random.normal(ks[11], (16,), jnp.float32))
    p["conv_w"] = 0.1 * jax.random.normal(ks[12], (1, 2, 3, 3), jnp.float32)
    p["a1"] = jax.random.normal(ks[13], (1,), jnp.float32)
    p["a2"] = jax.random.normal(ks[14], (1,), jnp.float32)
    p["a3"] = jax.random.normal(ks[15], (1,), jnp.float32)
    return p


# ----------------------------------------------------------------------------
# Pure-JAX reference (mimics the PyTorch forward, NCHW, eval-mode BN)
# ----------------------------------------------------------------------------
def cfc_reference(p, low, mid, high):
    eps = 1e-5

    def bn(x, g, b, m, v):
        return (x - m[None, :, None, None]) / jnp.sqrt(v[None, :, None, None] + eps) \
            * g[None, :, None, None] + b[None, :, None, None]

    def uplayer_ref(x, w, bias, g, be, m, v):
        y = jnp.einsum("bchw,oc->bohw", x, w) + bias[None, :, None, None]
        return jnp.maximum(bn(y, g, be, m, v), 0.0)

    def nearest(x, k):
        return jnp.repeat(jnp.repeat(x, k, axis=2), k, axis=3)

    high_f = uplayer_ref(high, p["w3"], p["b3"], p["bn3_gamma"], p["bn3_beta"],
                         p["bn3_mean"], p["bn3_var"])
    mid_f = uplayer_ref(mid, p["w4"], p["b4"], p["bn4_gamma"], p["bn4_beta"],
                        p["bn4_mean"], p["bn4_var"])
    h2l = nearest(high_f, 4)
    m2l = nearest(mid_f, 2)
    a1, a2, a3 = p["a1"][0], p["a2"][0], p["a3"][0]
    out1 = a1 * low + a2 * h2l + a3 * m2l
    out1 = out1 + low
    avg = jnp.mean(high_f, axis=1, keepdims=True)
    mx = jnp.max(high_f, axis=1, keepdims=True)
    kin = jnp.concatenate([avg, mx], axis=1)
    kf = jax.nn.sigmoid(jax.lax.conv_general_dilated(
        kin, p["conv_w"], (1, 1), ((1, 1), (1, 1)),
        dimension_numbers=("NCHW", "OIHW", "NCHW")))
    kf_mid = nearest(kf, 2)
    purity = mid_f * kf_mid
    purity = nearest(purity, 2)
    return purity + out1


if __name__ == "__main__":
    key = jax.random.PRNGKey(0)
    k1, k2, k3 = jax.random.split(key, 3)
    B = 2
    low = jax.random.normal(k1, (B, 16, 16, 16), jnp.float32)   # NCHW
    mid = jax.random.normal(k2, (B, 32, 8, 8), jnp.float32)     # NCHW
    high = jax.random.normal(k3, (B, 64, 4, 4), jnp.float32)    # NCHW

    params = init_params(jax.random.PRNGKey(42))

    out = jax.block_until_ready(cfc_forward(params, low, mid, high))

    ref = cfc_reference(params, low, mid, high)
    assert out.shape == (B, 16, 16, 16), out.shape
    max_err = float(jnp.max(jnp.abs(out - ref)))
    assert jnp.allclose(out, ref, atol=2e-3, rtol=2e-3), max_err
    print("KERNEL_OK")
</pallas_src>

<mosaic_0001>
module attributes {stable_mosaic.version = 11 : i64} {
  func.func @_cfc_kernel(%arg0: i32, %arg1: memref<3xf32, #tpu.memory_space<smem>>, %arg2: memref<1x16x256xf32, #tpu.memory_space<vmem>>, %arg3: memref<1x32x64xf32, #tpu.memory_space<vmem>>, %arg4: memref<1x64x16xf32, #tpu.memory_space<vmem>>, %arg5: memref<16x64xf32, #tpu.memory_space<vmem>>, %arg6: memref<16x1xf32, #tpu.memory_space<vmem>>, %arg7: memref<16x32xf32, #tpu.memory_space<vmem>>, %arg8: memref<16x1xf32, #tpu.memory_space<vmem>>, %arg9: memref<32x16xf32, #tpu.memory_space<vmem>>, %arg10: memref<16x256xf32, #tpu.memory_space<vmem>>, %arg11: memref<64x256xf32, #tpu.memory_space<vmem>>, %arg12: memref<1x16x256xf32, #tpu.memory_space<vmem>>) attributes {dimension_semantics = [#tpu.dimension_semantics<parallel>], iteration_bounds = array<i64: 2>, scalar_prefetch = 0 : i64, scratch_operands = 0 : i64, tpu.core_type = #tpu.core_type<tc>, window_params = [{transform_indices = @transform_0, window_bounds = array<i64: 3>}, {transform_indices = @transform_1, window_bounds = array<i64: 1, 16, 256>}, {transform_indices = @transform_2, window_bounds = array<i64: 1, 32, 64>}, {transform_indices = @transform_3, window_bounds = array<i64: 1, 64, 16>}, {pipeline_mode = #tpu.pipeline_mode<synchronous>, transform_indices = @transform_4, window_bounds = array<i64: 16, 64>}, {pipeline_mode = #tpu.pipeline_mode<synchronous>, transform_indices = @transform_5, window_bounds = array<i64: 16, 1>}, {pipeline_mode = #tpu.pipeline_mode<synchronous>, transform_indices = @transform_6, window_bounds = array<i64: 16, 32>}, {pipeline_mode = #tpu.pipeline_mode<synchronous>, transform_indices = @transform_7, window_bounds = array<i64: 16, 1>}, {pipeline_mode = #tpu.pipeline_mode<synchronous>, transform_indices = @transform_8, window_bounds = array<i64: 32, 16>}, {pipeline_mode = #tpu.pipeline_mode<synchronous>, transform_indices = @transform_9, window_bounds = array<i64: 16, 256>}, {pipeline_mode = #tpu.pipeline_mode<synchronous>, transform_indices = @transform_10, window_bounds = array<i64: 64, 256>}, {transform_indices = @transform_11, window_bounds = array<i64: 1, 16, 256>}]} {
    %c0 = arith.constant 0 : index
    %0 = memref.load %arg1[%c0] : memref<3xf32, #tpu.memory_space<smem>>
    %c1 = arith.constant 1 : index
    %1 = memref.load %arg1[%c1] : memref<3xf32, #tpu.memory_space<smem>>
    %c2 = arith.constant 2 : index
    %2 = memref.load %arg1[%c2] : memref<3xf32, #tpu.memory_space<smem>>
    %c0_0 = arith.constant 0 : index
    %c0_1 = arith.constant 0 : index
    %3 = vector.load %arg5[%c0_0, %c0_1] : memref<16x64xf32, #tpu.memory_space<vmem>>, vector<16x64xf32>
    %c0_2 = arith.constant 0 : index
    %c0_3 = arith.constant 0 : index
    %4 = vector.load %arg6[%c0_2, %c0_3] : memref<16x1xf32, #tpu.memory_space<vmem>>, vector<16x1xf32>
    %c0_4 = arith.constant 0 : index
    %c0_5 = arith.constant 0 : index
    %5 = vector.load %arg7[%c0_4, %c0_5] : memref<16x32xf32, #tpu.memory_space<vmem>>, vector<16x32xf32>
    %c0_6 = arith.constant 0 : index
    %c0_7 = arith.constant 0 : index
    %6 = vector.load %arg8[%c0_6, %c0_7] : memref<16x1xf32, #tpu.memory_space<vmem>>, vector<16x1xf32>
    %c0_8 = arith.constant 0 : index
    %c0_9 = arith.constant 0 : index
    %7 = vector.load %arg9[%c0_8, %c0_9] : memref<32x16xf32, #tpu.memory_space<vmem>>, vector<32x16xf32>
    %c0_10 = arith.constant 0 : index
    %c0_11 = arith.constant 0 : index
    %8 = vector.load %arg10[%c0_10, %c0_11] : memref<16x256xf32, #tpu.memory_space<vmem>>, vector<16x256xf32>
    %c0_12 = arith.constant 0 : index
    %c0_13 = arith.constant 0 : index
    %9 = vector.load %arg11[%c0_12, %c0_13] : memref<64x256xf32, #tpu.memory_space<vmem>>, vector<64x256xf32>
    %c0_14 = arith.constant 0 : index
    %c0_15 = arith.constant 0 : index
    %c0_16 = arith.constant 0 : index
    %10 = vector.load %arg2[%c0_14, %c0_15, %c0_16] : memref<1x16x256xf32, #tpu.memory_space<vmem>>, vector<1x16x256xf32>
    %11 = vector.shape_cast %10 : vector<1x16x256xf32> to vector<16x256xf32>
    %c0_17 = arith.constant 0 : index
    %c0_18 = arith.constant 0 : index
    %c0_19 = arith.constant 0 : index
    %12 = vector.load %arg3[%c0_17, %c0_18, %c0_19] : memref<1x32x64xf32, #tpu.memory_space<vmem>>, vector<1x32x64xf32>
    %13 = vector.shape_cast %12 : vector<1x32x64xf32> to vector<32x64xf32>
    %c0_20 = arith.constant 0 : index
    %c0_21 = arith.constant 0 : index
    %c0_22 = arith.constant 0 : index
    %14 = vector.load %arg4[%c0_20, %c0_21, %c0_22] : memref<1x64x16xf32, #tpu.memory_space<vmem>>, vector<1x64x16xf32>
    %15 = vector.shape_cast %14 : vector<1x64x16xf32> to vector<64x16xf32>
    %cst = arith.constant dense<0.000000e+00> : vector<16x16xf32>
    %16 = tpu.matmul %3, %15, %cst {dimension_numbers = #tpu.dot_dimension_numbers<[1], [0], [0], [1], [0, 0, 1, 1], [], []>} : vector<16x64xf32>, vector<64x16xf32>, vector<16x16xf32> -> vector<16x16xf32>
    %17 = vector.broadcast %4 : vector<16x1xf32> to vector<16x16xf32>
    %18 = arith.addf %16, %17 : vector<16x16xf32>
    %cst_23 = arith.constant 0.000000e+00 : f32
    %19 = vector.broadcast %cst_23 : f32 to vector<16x16xf32>
    %20 = arith.maximumf %18, %19 : vector<16x16xf32>
    %cst_24 = arith.constant dense<0.000000e+00> : vector<16x64xf32>
    %21 = tpu.matmul %5, %13, %cst_24 {dimension_numbers = #tpu.dot_dimension_numbers<[1], [0], [0], [1], [0, 0, 1, 1], [], []>} : vector<16x32xf32>, vector<32x64xf32>, vector<16x64xf32> -> vector<16x64xf32>
    %22 = vector.broadcast %6 : vector<16x1xf32> to vector<16x64xf32>
    %23 = arith.addf %21, %22 : vector<16x64xf32>
    %cst_25 = arith.constant 0.000000e+00 : f32
    %24 = vector.broadcast %cst_25 : f32 to vector<16x64xf32>
    %25 = arith.maximumf %23, %24 : vector<16x64xf32>
    %cst_26 = arith.constant dense<0.000000e+00> : vector<16xf32>
    %26 = vector.multi_reduction <add>, %20, %cst_26 [0] : vector<16x16xf32> to vector<16xf32>
    %27 = vector.shape_cast %26 : vector<16xf32> to vector<1x16xf32>
    %cst_27 = arith.constant dense<0xFF800000> : vector<16xf32>
    %28 = vector.multi_reduction <maximumf>, %20, %cst_27 [0] : vector<16x16xf32> to vector<16xf32>
    %29 = vector.shape_cast %28 : vector<16xf32> to vector<1x16xf32>
    %30 = tpu.concatenate %27, %29 in 1 : vector<1x16xf32>, vector<1x16xf32> -> vector<1x32xf32>
    %cst_28 = arith.constant dense<0.000000e+00> : vector<1x16xf32>
    %31 = tpu.matmul %30, %7, %cst_28 {dimension_numbers = #tpu.dot_dimension_numbers<[1], [0], [0], [1], [0, 0, 1, 1], [], []>} : vector<1x32xf32>, vector<32x16xf32>, vector<1x16xf32> -> vector<1x16xf32>
    %32 = arith.negf %31 : vector<1x16xf32>
    %33 = math.exp %32 : vector<1x16xf32>
    %cst_29 = arith.constant 1.000000e+00 : f32
    %34 = vector.broadcast %cst_29 : f32 to vector<1x16xf32>
    %35 = arith.addf %34, %33 : vector<1x16xf32>
    %36 = arith.divf %34, %35 : vector<1x16xf32>
    %37 = tpu.concatenate %20, %36 in 0 : vector<16x16xf32>, vector<1x16xf32> -> vector<17x16xf32>
    %cst_30 = arith.constant dense<0.000000e+00> : vector<17x256xf32>
    %38 = tpu.matmul %37, %8, %cst_30 {dimension_numbers = #tpu.dot_dimension_numbers<[1], [0], [0], [1], [0, 0, 1, 1], [], []>} : vector<17x16xf32>, vector<16x256xf32>, vector<17x256xf32> -> vector<17x256xf32>
    %39 = vector.extract_strided_slice %38 {offsets = [0, 0], sizes = [16, 256], strides = [1, 1]} : vector<17x256xf32> to vector<16x256xf32>
    %40 = vector.extract_strided_slice %38 {offsets = [16, 0], sizes = [1, 256], strides = [1, 1]} : vector<17x256xf32> to vector<1x256xf32>
    %cst_31 = arith.constant dense<0.000000e+00> : vector<16x256xf32>
    %41 = tpu.matmul %25, %9, %cst_31 {dimension_numbers = #tpu.dot_dimension_numbers<[1], [0], [0], [1], [0, 0, 1, 1], [], []>} : vector<16x64xf32>, vector<64x256xf32>, vector<16x256xf32> -> vector<16x256xf32>
    %42 = vector.broadcast %0 : f32 to vector<16x256xf32>
    %43 = arith.mulf %42, %11 : vector<16x256xf32>
    %44 = vector.broadcast %1 : f32 to vector<16x256xf32>
    %45 = arith.mulf %44, %39 : vector<16x256xf32>
    %46 = arith.addf %43, %45 : vector<16x256xf32>
    %47 = vector.broadcast %2 : f32 to vector<1x256xf32>
    %48 = arith.addf %47, %40 : vector<1x256xf32>
    %49 = vector.broadcast %48 : vector<1x256xf32> to vector<16x256xf32>
    %50 = arith.mulf %49, %41 : vector<16x256xf32>
    %51 = arith.addf %46, %50 : vector<16x256xf32>
    %c0_32 = arith.constant 0 : index
    %c0_33 = arith.constant 0 : index
    %c0_34 = arith.constant 0 : index
    %52 = vector.load %arg12[%c0_32, %c0_33, %c0_34] : memref<1x16x256xf32, #tpu.memory_space<vmem>>, vector<1x16x256xf32>
    %53 = vector.shape_cast %52 : vector<1x16x256xf32> to vector<16x256xf32>
    %54 = vector.shape_cast %51 : vector<16x256xf32> to vector<1x16x256xf32>
    tpu.vector_store %arg12[%c0_32, %c0_33, %c0_34], %54 {strides = array<i32>} : memref<1x16x256xf32, #tpu.memory_space<vmem>>, vector<1x16x256xf32>,
    return
  }
  func.func @transform_0(%arg0: i32) -> i32 {
    %c0_i32 = arith.constant 0 : i32
    %c0_i32_0 = arith.constant 0 : i32
    return %c0_i32 : i32
  }
  func.func @transform_1(%arg0: i32) -> (i32, i32, i32) {
    %c0_i32 = arith.constant 0 : i32
    %c0_i32_0 = arith.constant 0 : i32
    %c0_i32_1 = arith.constant 0 : i32
    return %arg0, %c0_i32, %c0_i32_0 : i32, i32, i32
  }
  func.func @transform_2(%arg0: i32) -> (i32, i32, i32) {
    %c0_i32 = arith.constant 0 : i32
    %c0_i32_0 = arith.constant 0 : i32
    %c0_i32_1 = arith.constant 0 : i32
    return %arg0, %c0_i32, %c0_i32_0 : i32, i32, i32
  }
  func.func @transform_3(%arg0: i32) -> (i32, i32, i32) {
    %c0_i32 = arith.constant 0 : i32
    %c0_i32_0 = arith.constant 0 : i32
    %c0_i32_1 = arith.constant 0 : i32
    return %arg0, %c0_i32, %c0_i32_0 : i32, i32, i32
  }
  func.func @transform_4(%arg0: i32) -> (i32, i32) {
    %c0_i32 = arith.constant 0 : i32
    %c0_i32_0 = arith.constant 0 : i32
    %c0_i32_1 = arith.constant 0 : i32
    return %c0_i32, %c0_i32_0 : i32, i32
  }
  func.func @transform_5(%arg0: i32) -> (i32, i32) {
    %c0_i32 = arith.constant 0 : i32
    %c0_i32_0 = arith.constant 0 : i32
    %c0_i32_1 = arith.constant 0 : i32
    return %c0_i32, %c0_i32_0 : i32, i32
  }
  func.func @transform_6(%arg0: i32) -> (i32, i32) {
    %c0_i32 = arith.constant 0 : i32
    %c0_i32_0 = arith.constant 0 : i32
    %c0_i32_1 = arith.constant 0 : i32
    return %c0_i32, %c0_i32_0 : i32, i32
  }
  func.func @transform_7(%arg0: i32) -> (i32, i32) {
    %c0_i32 = arith.constant 0 : i32
    %c0_i32_0 = arith.constant 0 : i32
    %c0_i32_1 = arith.constant 0 : i32
    return %c0_i32, %c0_i32_0 : i32, i32
  }
  func.func @transform_8(%arg0: i32) -> (i32, i32) {
    %c0_i32 = arith.constant 0 : i32
    %c0_i32_0 = arith.constant 0 : i32
    %c0_i32_1 = arith.constant 0 : i32
    return %c0_i32, %c0_i32_0 : i32, i32
  }
  func.func @transform_9(%arg0: i32) -> (i32, i32) {
    %c0_i32 = arith.constant 0 : i32
    %c0_i32_0 = arith.constant 0 : i32
    %c0_i32_1 = arith.constant 0 : i32
    return %c0_i32, %c0_i32_0 : i32, i32
  }
  func.func @transform_10(%arg0: i32) -> (i32, i32) {
    %c0_i32 = arith.constant 0 : i32
    %c0_i32_0 = arith.constant 0 : i32
    %c0_i32_1 = arith.constant 0 : i32
    return %c0_i32, %c0_i32_0 : i32, i32
  }
  func.func @transform_11(%arg0: i32) -> (i32, i32, i32) {
    %c0_i32 = arith.constant 0 : i32
    %c0_i32_0 = arith.constant 0 : i32
    %c0_i32_1 = arith.constant 0 : i32
    return %arg0, %c0_i32, %c0_i32_0 : i32, i32, i32
  }
}

</mosaic_0001>

<llo_original>
// kernel: cfc_forward.1
$region0: #{cfc_forward.1}
  #allocation0 [shape = 'u32[]', space=smem, size = 0x4, offset = 0x4, fixed_abs, tag = 'smem constant byte address 0x4 - core index']
  #allocation1 [shape = 'u32[144,128]{1,0:T(1,128)}', space=vmem, size = 0x12000, scoped, tag = 'internal scratch']
  %s0 = inlined_call_operand.vmem [shape: f32[3], index: 0, kind: input, shape index: {}]
  %s1 = inlined_call_operand.vmem [shape: f32[2,16,256], index: 1, kind: input, shape index: {}]
  %s2 = inlined_call_operand.vmem [shape: f32[2,32,64], index: 2, kind: input, shape index: {}]
  %s3 = inlined_call_operand.vmem [shape: f32[2,64,16], index: 3, kind: input, shape index: {}]
  %s4 = inlined_call_operand.vmem [shape: f32[16,64], index: 4, kind: input, shape index: {}]
  %s5 = inlined_call_operand.vmem [shape: f32[16,1], index: 5, kind: input, shape index: {}]
  %s6 = inlined_call_operand.vmem [shape: f32[16,32], index: 6, kind: input, shape index: {}]
  %s7 = inlined_call_operand.vmem [shape: f32[16,1], index: 7, kind: input, shape index: {}]
  %s8 = inlined_call_operand.vmem [shape: f32[32,16], index: 8, kind: input, shape index: {}]
  %s9 = inlined_call_operand.vmem [shape: f32[16,256], index: 9, kind: input, shape index: {}]
  %s10 = inlined_call_operand.vmem [shape: f32[64,256], index: 10, kind: input, shape index: {}]
  %s11 = inlined_call_operand.vmem [shape: f32[2,16,256], index: 11, kind: output, shape index: {}]
  %s12 = sld [smem:[#allocation0]]
  $region81: #{cfc_forward.1} parent=0
    _
  %s14 = ssub.s32 1, %s12
  %s15 = scalar_select 0, %s14, %s12
  $region1: #{cfc_forward.1} parent=0
    #allocation2 [shape = 'u8[512]{0}', space=smem, size = 0x200, scoped, tag = 'input window, operand 0, single buffered']
    #allocation3 [shape = 's32[2]{0}', space=sflag, size = 0x8, scoped, tag = 'scoped memory for cfc_forward.1']
    %16 = vsyncpa [#allocation3], 0
    loop: start=0, step=1, limit=4
    $region2: #{cfc_forward.1} parent=1 // loop_pre_header
      _
    $region3: #{cfc_forward.1} parent=1 // loop_header
      %s18 = sphi 0, %s22
      %p19 = scmp.ge.s32.totalorder %s18, 4
      %s26 = sphi 0, %s26
      %s28 = sphi 0, %s26
      %s29 = sphi 0, %s28
      %s43 = sphi 0, %s29
      %s49 = sphi 0, %s51
      %s52 = sphi 0, %s49
      %s53 = sphi 0, %s52
      %s69 = sphi 0, %s53
      %s75 = sphi 0, %s77
      %s78 = sphi 0, %s75
      %s79 = sphi 0, %s78
      %s95 = sphi 0, %s79
      %s101 = sphi 0, %s103
      %s104 = sphi 0, %s101
      %s105 = sphi 0, %s104
      %s121 = sphi 0, %s105
      %s125 = sphi 0, %s125
      %s127 = sphi 0, %s125
      %s128 = sphi 0, %s127
      %s142 = sphi 0, %s128
      %s146 = sphi 0, %s146
      %s148 = sphi 0, %s146
      %s149 = sphi 0, %s148
      %s163 = sphi 0, %s149
      %s167 = sphi 0, %s167
      %s169 = sphi 0, %s167
      %s170 = sphi 0, %s169
      %s184 = sphi 0, %s170
      %s188 = sphi 0, %s188
      %s190 = sphi 0, %s188
      %s191 = sphi 0, %s190
      %s205 = sphi 0, %s191
      %s209 = sphi 0, %s209
      %s211 = sphi 0, %s209
      %s212 = sphi 0, %s211
      %s226 = sphi 0, %s212
      %s230 = sphi 0, %s230
      %s232 = sphi 0, %s230
      %s233 = sphi 0, %s232
      %s247 = sphi 0, %s233
      %s251 = sphi 0, %s251
      %s253 = sphi 0, %s251
      %s254 = sphi 0, %s253
      %s268 = sphi 0, %s254
      %s274 = sphi 0, %s276
      %s277 = sphi 0, %s274
      %s278 = sphi 0, %s277
      %s294 = sphi 0, %s278
    $region4: #{cfc_forward.1} parent=1 // loop_header_branch
      %21 = sbr.rel (%p19) target = $region8
    $region5: #{cfc_forward.1} parent=1 // loop_body
      %s23 = ssub.s32 %s18, 1
      %s24 = ssub.s32 %s18, 2
      %s25 = sadd.s32 %s18, 1
      %s27 = sadd.s32 %s26, 1
      %p30 = scmp.eq.s32.totalorder %s18, 1
      %p31 = scmp.ne.s32.totalorder %s26, %s28
      %p32 = scmp.eq.s32.totalorder %s18, 0
      %p33 = por %p31, %p32
      %p34 = scmp.ne.s32.totalorder %s26, %s28
      %p35 = scmp.eq.s32.totalorder %s23, 1
      %p36 = por %p34, %p35
      %p37 = scmp.ne.s32.totalorder %s28, %s29
      %p38 = scmp.eq.s32.totalorder %s23, 0
      %p39 = por %p37, %p38
      %p40 = scmp.ne.s32.totalorder %s28, %s29
      %p41 = scmp.eq.s32.totalorder %s24, 1
      %p42 = por %p40, %p41
      %p44 = scmp.ne.s32.totalorder %s29, %s43
      %p45 = scmp.eq.s32.totalorder %s24, 0
      %p46 = por %p44, %p45
      %s47 = ssub.s32 %s18, %s25
      %p48 = scmp.eq.s32.totalorder %s47, 0
      %s50 = sadd.s32 %s49, 1
      %s51 = scalar_select %p48, %s49, %s50
      %p54 = pneg %p48
      %p55 = scmp.eq.s32.totalorder %s18, 1
      %p56 = por %p54, %p55
      %p57 = scmp.ne.s32.totalorder %s49, %s52
      %p58 = scmp.eq.s32.totalorder %s18, 0
      %p59 = por %p57, %p58
      %p60 = scmp.ne.s32.totalorder %s49, %s52
      %p61 = scmp.eq.s32.totalorder %s23, 1
      %p62 = por %p60, %p61
      %p63 = scmp.ne.s32.totalorder %s52, %s53
      %p64 = scmp.eq.s32.totalorder %s23, 0
      %p65 = por %p63, %p64
      %p66 = scmp.ne.s32.totalorder %s52, %s53
      %p67 = scmp.eq.s32.totalorder %s24, 1
      %p68 = por %p66, %p67
      %p70 = scmp.ne.s32.totalorder %s53, %s69
      %p71 = scmp.eq.s32.totalorder %s24, 0
      %p72 = por %p70, %p71
      %s73 = ssub.s32 %s18, %s25
      %p74 = scmp.eq.s32.totalorder %s73, 0
      %s76 = sadd.s32 %s75, 1
      %s77 = scalar_select %p74, %s75, %s76
      %p80 = pneg %p74
      %p81 = scmp.eq.s32.totalorder %s18, 1
      %p82 = por %p80, %p81
      %p83 = scmp.ne.s32.totalorder %s75, %s78
      %p84 = scmp.eq.s32.totalorder %s18, 0
      %p85 = por %p83, %p84
      %p86 = scmp.ne.s32.totalorder %s75, %s78
      %p87 = scmp.eq.s32.totalorder %s23, 1
      %p88 = por %p86, %p87
      %p89 = scmp.ne.s32.totalorder %s78, %s79
      %p90 = scmp.eq.s32.totalorder %s23, 0
      %p91 = por %p89, %p90
      %p92 = scmp.ne.s32.totalorder %s78, %s79
      %p93 = scmp.eq.s32.totalorder %s24, 1
      %p94 = por %p92, %p93
      %p96 = scmp.ne.s32.totalorder %s79, %s95
      %p97 = scmp.eq.s32.totalorder %s24, 0
      %p98 = por %p96, %p97
      %s99 = ssub.s32 %s18, %s25
      %p100 = scmp.eq.s32.totalorder %s99, 0
      %s102 = sadd.s32 %s101, 1
      %s103 = scalar_select %p100, %s101, %s102
      %p106 = pneg %p100
      %p107 = scmp.eq.s32.totalorder %s18, 1
      %p108 = por %p106, %p107
      %p109 = scmp.ne.s32.totalorder %s101, %s104
      %p110 = scmp.eq.s32.totalorder %s18, 0
      %p111 = por %p109, %p110
      %p112 = scmp.ne.s32.totalorder %s101, %s104
      %p113 = scmp.eq.s32.totalorder %s23, 1
      %p114 = por %p112, %p113
      %p115 = scmp.ne.s32.totalorder %s104, %s105
      %p116 = scmp.eq.s32.totalorder %s23, 0
      %p117 = por %p115, %p116
      %p118 = scmp.ne.s32.totalorder %s104, %s105
      %p119 = scmp.eq.s32.totalorder %s24, 1
      %p120 = por %p118, %p119
      %p122 = scmp.ne.s32.totalorder %s105, %s121
      %p123 = scmp.eq.s32.totalorder %s24, 0
      %p124 = por %p122, %p123
      %s126 = sadd.s32 %s125, 1
      %p129 = scmp.eq.s32.totalorder %s18, 1
      %p130 = scmp.ne.s32.totalorder %s125, %s127
      %p131 = scmp.eq.s32.totalorder %s18, 0
      %p132 = por %p130, %p131
      %p133 = scmp.ne.s32.totalorder %s125, %s127
      %p134 = scmp.eq.s32.totalorder %s23, 1
      %p135 = por %p133, %p134
      %p136 = scmp.ne.s32.totalorder %s127, %s128
      %p137 = scmp.eq.s32.totalorder %s23, 0
      %p138 = por %p136, %p137
      %p139 = scmp.ne.s32.totalorder %s127, %s128
      %p140 = scmp.eq.s32.totalorder %s24, 1
      %p141 = por %p139, %p140
      %p143 = scmp.ne.s32.totalorder %s128, %s142
      %p144 = scmp.eq.s32.totalorder %s24, 0
      %p145 = por %p143, %p144
      %s147 = sadd.s32 %s146, 1
      %p150 = scmp.eq.s32.totalorder %s18, 1
      %p151 = scmp.ne.s32.totalorder %s146, %s148
      %p152 = scmp.eq.s32.totalorder %s18, 0
      %p153 = por %p151, %p152
      %p154 = scmp.ne.s32.totalorder %s146, %s148
      %p155 = scmp.eq.s32.totalorder %s23, 1
      %p156 = por %p154, %p155
      %p157 = scmp.ne.s32.totalorder %s148, %s149
      %p158 = scmp.eq.s32.totalorder %s23, 0
      %p159 = por %p157, %p158
      %p160 = scmp.ne.s32.totalorder %s148, %s149
      %p161 = scmp.eq.s32.totalorder %s24, 1
      %p162 = por %p160, %p161
      %p164 = scmp.ne.s32.totalorder %s149, %s163
      %p165 = scmp.eq.s32.totalorder %s24, 0
      %p166 = por %p164, %p165
      %s168 = sadd.s32 %s167, 1
      %p171 = scmp.eq.s32.totalorder %s18, 1
      %p172 = scmp.ne.s32.totalorder %s167, %s169
      %p173 = scmp.eq.s32.totalorder %s18, 0
      %p174 = por %p172, %p173
      %p175 = scmp.ne.s32.totalorder %s167, %s169
      %p176 = scmp.eq.s32.totalorder %s23, 1
      %p177 = por %p175, %p176
      %p178 = scmp.ne.s32.totalorder %s169, %s170
      %p179 = scmp.eq.s32.totalorder %s23, 0
      %p180 = por %p178, %p179
      %p181 = scmp.ne.s32.totalorder %s169, %s170
      %p182 = scmp.eq.s32.totalorder %s24, 1
      %p183 = por %p181, %p182
      %p185 = scmp.ne.s32.totalorder %s170, %s184
      %p186 = scmp.eq.s32.totalorder %s24, 0
      %p187 = por %p185, %p186
      %s189 = sadd.s32 %s188, 1
      %p192 = scmp.eq.s32.totalorder %s18, 1
      %p193 = scmp.ne.s32.totalorder %s188, %s190
      %p194 = scmp.eq.s32.totalorder %s18, 0
      %p195 = por %p193, %p194
      %p196 = scmp.ne.s32.totalorder %s188, %s190
      %p197 = scmp.eq.s32.totalorder %s23, 1
      %p198 = por %p196, %p197
      %p199 = scmp.ne.s32.totalorder %s190, %s191
      %p200 = scmp.eq.s32.totalorder %s23, 0
      %p201 = por %p199, %p200
      %p202 = scmp.ne.s32.totalorder %s190, %s191
      %p203 = scmp.eq.s32.totalorder %s24, 1
      %p204 = por %p202, %p203
      %p206 = scmp.ne.s32.totalorder %s191, %s205
      %p207 = scmp.eq.s32.totalorder %s24, 0
      %p208 = por %p206, %p207
      %s210 = sadd.s32 %s209, 1
      %p213 = scmp.eq.s32.totalorder %s18, 1
      %p214 = scmp.ne.s32.totalorder %s209, %s211
      %p215 = scmp.eq.s32.totalorder %s18, 0
      %p216 = por %p214, %p215
      %p217 = scmp.ne.s32.totalorder %s209, %s211
      %p218 = scmp.eq.s32.totalorder %s23, 1
      %p219 = por %p217, %p218
      %p220 = scmp.ne.s32.totalorder %s211, %s212
      %p221 = scmp.eq.s32.totalorder %s23, 0
      %p222 = por %p220, %p221
      %p223 = scmp.ne.s32.totalorder %s211, %s212
      %p224 = scmp.eq.s32.totalorder %s24, 1
      %p225 = por %p223, %p224
      %p227 = scmp.ne.s32.totalorder %s212, %s226
      %p228 = scmp.eq.s32.totalorder %s24, 0
      %p229 = por %p227, %p228
      %s231 = sadd.s32 %s230, 1
      %p234 = scmp.eq.s32.totalorder %s18, 1
      %p235 = scmp.ne.s32.totalorder %s230, %s232
      %p236 = scmp.eq.s32.totalorder %s18, 0
      %p237 = por %p235, %p236
      %p238 = scmp.ne.s32.totalorder %s230, %s232
      %p239 = scmp.eq.s32.totalorder %s23, 1
      %p240 = por %p238, %p239
      %p241 = scmp.ne.s32.totalorder %s232, %s233
      %p242 = scmp.eq.s32.totalorder %s23, 0
      %p243 = por %p241, %p242
      %p244 = scmp.ne.s32.totalorder %s232, %s233
      %p245 = scmp.eq.s32.totalorder %s24, 1
      %p246 = por %p244, %p245
      %p248 = scmp.ne.s32.totalorder %s233, %s247
      %p249 = scmp.eq.s32.totalorder %s24, 0
      %p250 = por %p248, %p249
      %s252 = sadd.s32 %s251, 1
      %p255 = scmp.eq.s32.totalorder %s18, 1
      %p256 = scmp.ne.s32.totalorder %s251, %s253
      %p257 = scmp.eq.s32.totalorder %s18, 0
      %p258 = por %p256, %p257
      %p259 = scmp.ne.s32.totalorder %s251, %s253
      %p260 = scmp.eq.s32.totalorder %s23, 1
      %p261 = por %p259, %p260
      %p262 = scmp.ne.s32.totalorder %s253, %s254
      %p263 = scmp.eq.s32.totalorder %s23, 0
      %p264 = por %p262, %p263
      %p265 = scmp.ne.s32.totalorder %s253, %s254
      %p266 = scmp.eq.s32.totalorder %s24, 1
      %p267 = por %p265, %p266
      %p269 = scmp.ne.s32.totalorder %s254, %s268
      %p270 = scmp.eq.s32.totalorder %s24, 0
      %p271 = por %p269, %p270
      %s272 = ssub.s32 %s18, %s25
      %p273 = scmp.eq.s32.totalorder %s272, 0
      %s275 = sadd.s32 %s274, 1
      %s276 = scalar_select %p273, %s274, %s275
      %p279 = pneg %p273
      %p280 = scmp.eq.s32.totalorder %s18, 1
      %p281 = por %p279, %p280
      %p282 = scmp.ne.s32.totalorder %s274, %s277
      %p283 = scmp.eq.s32.totalorder %s18, 0
      %p284 = por %p282, %p283
      %p285 = scmp.ne.s32.totalorder %s274, %s277
      %p286 = scmp.eq.s32.totalorder %s23, 1
      %p287 = por %p285, %p286
      %p288 = scmp.ne.s32.totalorder %s277, %s278
      %p289 = scmp.eq.s32.totalorder %s23, 0
      %p290 = por %p288, %p289
      %p291 = scmp.ne.s32.totalorder %s277, %s278
      %p292 = scmp.eq.s32.totalorder %s24, 1
      %p293 = por %p291, %p292
      %p295 = scmp.ne.s32.totalorder %s278, %s294
      %p296 = scmp.eq.s32.totalorder %s24, 0
      %p297 = por %p295, %p296
      %p298 = scmp.le.s32.totalorder 1, %s18
      %p299 = scmp.lt.s32.totalorder %s18, 3
      %p300 = pnand %p298, %p299
      %p301 = pneg %p300
      // Predicated region
      $region9: #{cfc_forward.1} parent=5 // pred_check
        _
      $region10: #{cfc_forward.1} parent=5 // pred_check_branch
        %303 = sbr.rel (%p300) target = $region12
      $region11: #{cfc_forward.1} parent=5 // pred_region
        %s304 = ssub.s32 %s18, 1
        // Predicated region
        $region13: #{cfc_forward.1} parent=11 // pred_check
          %p305 = pneg %p39
        $region14: #{cfc_forward.1} parent=11 // pred_check_branch
          %307 = sbr.rel (%p305) target = $region16
        $region15: #{cfc_forward.1} parent=11 // pred_region
          %s309 = ssub.s32 16, 16
          %310 = vsyncadd [#allocation3], %s309
          %s312 = sshll.u32 %s0, 4
          %s313 = int_to_ptr.vmem [resolvable:$true] %s312
          %315 = dma.vmem_to_smem %s313, 16, [#allocation2], [#allocation3]
        $region16: #{cfc_forward.1} parent=11 // pred_fallthru
          _
        // Predicated region
        $region17: #{cfc_forward.1} parent=11 // pred_check
          %p316 = pneg %p138
        $region18: #{cfc_forward.1} parent=11 // pred_check_branch
          %318 = sbr.rel (%p316) target = $region20
        $region19: #{cfc_forward.1} parent=11 // pred_region
          _
        $region20: #{cfc_forward.1} parent=11 // pred_fallthru
          _
        // Predicated region
        $region21: #{cfc_forward.1} parent=11 // pred_check
          %p319 = pneg %p159
        $region22: #{cfc_forward.1} parent=11 // pred_check_branch
          %321 = sbr.rel (%p319) target = $region24
        $region23: #{cfc_forward.1} parent=11 // pred_region
          _
        $region24: #{cfc_forward.1} parent=11 // pred_fallthru
          _
        // Predicated region
        $region25: #{cfc_forward.1} parent=11 // pred_check
          %p322 = pneg %p180
        $region26: #{cfc_forward.1} parent=11 // pred_check_branch
          %324 = sbr.rel (%p322) target = $region28
        $region27: #{cfc_forward.1} parent=11 // pred_region
          _
        $region28: #{cfc_forward.1} parent=11 // pred_fallthru
          _
        // Predicated region
        $region29: #{cfc_forward.1} parent=11 // pred_check
          %p325 = pneg %p201
        $region30: #{cfc_forward.1} parent=11 // pred_check_branch
          %327 = sbr.rel (%p325) target = $region32
        $region31: #{cfc_forward.1} parent=11 // pred_region
          _
        $region32: #{cfc_forward.1} parent=11 // pred_fallthru
          _
        // Predicated region
        $region33: #{cfc_forward.1} parent=11 // pred_check
          %p328 = pneg %p222
        $region34: #{cfc_forward.1} parent=11 // pred_check_branch
          %330 = sbr.rel (%p328) target = $region36
        $region35: #{cfc_forward.1} parent=11 // pred_region
          _
        $region36: #{cfc_forward.1} parent=11 // pred_fallthru
          _
        // Predicated region
        $region37: #{cfc_forward.1} parent=11 // pred_check
          %p331 = pneg %p243
        $region38: #{cfc_forward.1} parent=11 // pred_check_branch
          %333 = sbr.rel (%p331) target = $region40
        $region39: #{cfc_forward.1} parent=11 // pred_region
          _
        $region40: #{cfc_forward.1} parent=11 // pred_fallthru
          _
        // Predicated region
        $region41: #{cfc_forward.1} parent=11 // pred_check
          %p334 = pneg %p264
        $region42: #{cfc_forward.1} parent=11 // pred_check_branch
          %336 = sbr.rel (%p334) target = $region44
        $region43: #{cfc_forward.1} parent=11 // pred_region
          _
        $region44: #{cfc_forward.1} parent=11 // pred_fallthru
          _
      $region12: #{cfc_forward.1} parent=5 // pred_fallthru
        _
      %p337 = scmp.lt.s32.totalorder %s18, 2
      // Predicated region
      $region45: #{cfc_forward.1} parent=5 // pred_check
        %p338 = pneg %p337
      $region46: #{cfc_forward.1} parent=5 // pred_check_branch
        %340 = sbr.rel (%p338) target = $region48
      $region47: #{cfc_forward.1} parent=5 // pred_region
        // Predicated region
        $region49: #{cfc_forward.1} parent=47 // pred_check
          %p341 = pneg %p59
        $region50: #{cfc_forward.1} parent=47 // pred_check_branch
          %343 = sbr.rel (%p341) target = $region52
        $region51: #{cfc_forward.1} parent=47 // pred_region
          %p344 = scmp.lt.s32.totalorder %s18, 1
          %s345 = scalar_select %p344, %s18, 1
          %s346 = smul.addr %s345, 4
          %s347 = smul.addr %s346, 8
          %s348 = scalar_lea.vmem %s1, %s347
        $region52: #{cfc_forward.1} parent=47 // pred_fallthru
          _
        // Predicated region
        $region53: #{cfc_forward.1} parent=47 // pred_check
          %p349 = pneg %p85
        $region54: #{cfc_forward.1} parent=47 // pred_check_branch
          %351 = sbr.rel (%p349) target = $region56
        $region55: #{cfc_forward.1} parent=47 // pred_region
          %p352 = scmp.lt.s32.totalorder %s18, 1
          %s353 = scalar_select %p352, %s18, 1
          %s354 = smul.addr %s353, 4
          %s355 = smul.addr %s354, 8
          %s356 = scalar_lea.vmem %s2, %s355
        $region56: #{cfc_forward.1} parent=47 // pred_fallthru
          _
        // Predicated region
        $region57: #{cfc_forward.1} parent=47 // pred_check
          %p357 = pneg %p111
        $region58: #{cfc_forward.1} parent=47 // pred_check_branch
          %359 = sbr.rel (%p357) target = $region60
        $region59: #{cfc_forward.1} parent=47 // pred_region
          %p360 = scmp.lt.s32.totalorder %s18, 1
          %s361 = scalar_select %p360, %s18, 1
          %s362 = smul.addr %s361, 8
          %s363 = smul.addr %s362, 8
          %s364 = scalar_lea.vmem %s3, %s363
        $region60: #{cfc_forward.1} parent=47 // pred_fallthru
          _
      $region48: #{cfc_forward.1} parent=5 // pred_fallthru
        _
      %p365 = scmp.le.s32.totalorder 1, %s18
      %p366 = scmp.lt.s32.totalorder %s18, 3
      %p367 = pnand %p365, %p366
      %p368 = pneg %p367
      // Predicated region
      $region61: #{cfc_forward.1} parent=5 // pred_check
        _
      $region62: #{cfc_forward.1} parent=5 // pred_check_branch
        %370 = sbr.rel (%p367) target = $region64
      $region63: #{cfc_forward.1} parent=5 // pred_region
        %s371 = ssub.s32 %s18, 1
        // Predicated region
        $region65: #{cfc_forward.1} parent=63 // pred_check
          %p372 = pneg %p39
        $region66: #{cfc_forward.1} parent=63 // pred_check_branch
          %374 = sbr.rel (%p372) target = $region68
        $region67: #{cfc_forward.1} parent=63 // pred_region
          %375 = dma.done [#allocation3], 16
        $region68: #{cfc_forward.1} parent=63 // pred_fallthru
          _
        %376 = sfence
        %p377 = pneg %p39
        %p378 = pneg %p36
        %p379 = scmp.lt.s32.totalorder %s23, 1
        %s380 = scalar_select %p379, %s23, 1
        %s381 = smul.addr %s380, 4
        %s382 = smul.addr %s381, 8
        %s383 = scalar_lea.vmem %s1, %s382
        %p384 = pneg %p65
        %p385 = pneg %p62
        %p386 = scmp.lt.s32.totalorder %s23, 1
        %s387 = scalar_select %p386, %s23, 1
        %s388 = smul.addr %s387, 4
        %s389 = smul.addr %s388, 8
        %s390 = scalar_lea.vmem %s2, %s389
        %p391 = pneg %p91
        %p392 = pneg %p88
        %p393 = scmp.lt.s32.totalorder %s23, 1
        %s394 = scalar_select %p393, %s23, 1
        %s395 = smul.addr %s394, 8
        %s396 = smul.addr %s395, 8
        %s397 = scalar_lea.vmem %s3, %s396
        %p398 = pneg %p117
        %p399 = pneg %p114
        %p400 = pneg %p138
        %p401 = pneg %p135
        %p402 = pneg %p159
        %p403 = pneg %p156
        %p404 = pneg %p180
        %p405 = pneg %p177
        %p406 = pneg %p201
        %p407 = pneg %p198
        %p408 = pneg %p222
        %p409 = pneg %p219
        %p410 = pneg %p243
        %p411 = pneg %p240
        %p412 = pneg %p264
        %p413 = pneg %p261
        %p414 = pneg %p290
        %p415 = pneg %p287
        %p416 = scmp.lt.s32.totalorder %s23, 1
        %s417 = scalar_select %p416, %s23, 1
        %s418 = smul.addr %s417, 4
        %s419 = smul.addr %s418, 8
        %s420 = scalar_lea.vmem %s11, %s419
        %p421 = scmp.lt.s32.totalorder %s23, 1
        %s422 = scalar_select %p421, %s23, 1
        %s423 = smul.addr %s422, 4
        %s424 = smul.addr %s423, 8
        %s425 = scalar_lea.vmem %s1, %s424
        %p426 = scmp.lt.s32.totalorder %s23, 1
        %s427 = scalar_select %p426, %s23, 1
        %s428 = smul.addr %s427, 4
        %s429 = smul.addr %s428, 8
        %s430 = scalar_lea.vmem %s2, %s429
        %p431 = scmp.lt.s32.totalorder %s23, 1
        %s432 = scalar_select %p431, %s23, 1
        %s433 = smul.addr %s432, 8
        %s434 = smul.addr %s433, 8
        %s435 = scalar_lea.vmem %s3, %s434
        %p436 = scmp.lt.s32.totalorder %s23, 1
        %s437 = scalar_select %p436, %s23, 1
        %s438 = smul.addr %s437, 4
        %s439 = smul.addr %s438, 8
        %s440 = scalar_lea.vmem %s11, %s439
        %s441 = sld [smem:[#allocation2]]
        %s442 = sld [smem:[#allocation2 + $0x1]]
        %s443 = sld [smem:[#allocation2 + $0x2]]
        %v444 = vld [vmem:[%s4] sm:$0xff]
        %v445 = vld [vmem:[%s4 + $0x8] sm:$0xff]
        %v446 = vld [vmem:[%s5] sm:$0xff]
        %v447 = vld [vmem:[%s5 + $0x8] sm:$0xff]
        %v448 = vld [vmem:[%s6] sm:$0xff]
        %v449 = vld [vmem:[%s6 + $0x8] sm:$0xff]
        %v450 = vld [vmem:[%s7] sm:$0xff]
        %v451 = vld [vmem:[%s7 + $0x8] sm:$0xff]
        %v452 = vld [vmem:[%s8] sm:$0xff]
        %v453 = vld [vmem:[%s8 + $0x8] sm:$0xff]
        %v454 = vld [vmem:[%s8 + $0x10] sm:$0xff]
        %v455 = vld [vmem:[%s8 + $0x18] sm:$0xff]
        %v456 = vld [vmem:[%s9] sm:$0xff]
        %v457 = vld [vmem:[%s9 + $0x8] sm:$0xff]
        %v458 = vld [vmem:[%s9 + $0x10] sm:$0xff]
        %v459 = vld [vmem:[%s9 + $0x18] sm:$0xff]
        %v460 = vld [vmem:[%s10] sm:$0xff]
        %v461 = vld [vmem:[%s10 + $0x8] sm:$0xff]
        %v462 = vld [vmem:[%s10 + $0x10] sm:$0xff]
        %v463 = vld [vmem:[%s10 + $0x18] sm:$0xff]
        %v464 = vld [vmem:[%s10 + $0x20] sm:$0xff]
        %v465 = vld [vmem:[%s10 + $0x28] sm:$0xff]
        %v466 = vld [vmem:[%s10 + $0x30] sm:$0xff]
        %v467 = vld [vmem:[%s10 + $0x38] sm:$0xff]
        %v468 = vld [vmem:[%s10 + $0x40] sm:$0xff]
        %v469 = vld [vmem:[%s10 + $0x48] sm:$0xff]
        %v470 = vld [vmem:[%s10 + $0x50] sm:$0xff]
        %v471 = vld [vmem:[%s10 + $0x58] sm:$0xff]
        %v472 = vld [vmem:[%s10 + $0x60] sm:$0xff]
        %v473 = vld [vmem:[%s10 + $0x68] sm:$0xff]
        %v474 = vld [vmem:[%s10 + $0x70] sm:$0xff]
        %v475 = vld [vmem:[%s10 + $0x78] sm:$0xff]
        %v476 = vld [vmem:[%s425] sm:$0xff]
        %v477 = vld [vmem:[%s425 + $0x8] sm:$0xff]
        %v478 = vld [vmem:[%s425 + $0x10] sm:$0xff]
        %v479 = vld [vmem:[%s425 + $0x18] sm:$0xff]
        %v480 = vld [vmem:[%s430] sm:$0xff]
        %v481 = vld [vmem:[%s430 + $0x8] sm:$0xff]
        %v482 = vld [vmem:[%s430 + $0x10] sm:$0xff]
        %v483 = vld [vmem:[%s430 + $0x18] sm:$0xff]
        %v484 = vld [vmem:[%s435] sm:$0xff]
        %v485 = vld [vmem:[%s435 + $0x8] sm:$0xff]
        %v486 = vld [vmem:[%s435 + $0x10] sm:$0xff]
        %v487 = vld [vmem:[%s435 + $0x18] sm:$0xff]
        %v488 = vld [vmem:[%s435 + $0x20] sm:$0xff]
        %v489 = vld [vmem:[%s435 + $0x28] sm:$0xff]
        %v490 = vld [vmem:[%s435 + $0x30] sm:$0xff]
        %v491 = vld [vmem:[%s435 + $0x38] sm:$0xff]
        %493 = vset.pattern.permute.xlu0 0
        %494 = vperm.xlu0 %493, %v446
        %v495 = vpop.permute.xlu0 %494
        %498 = vset.pattern.permute.xlu0 0
        %499 = vperm.xlu0 %498, %v447
        %v500 = vpop.permute.xlu0 %499
        %vm502 = vcmask 523264
        %v504 = vsel %vm502, %v444, 0
        %v507 = vsel %vm502, %v445, 0
        %509 = vmatprep.subr.mxu0 0.0
        %510 = vmatpush1.msra.mxu0 %v484
        %511 = vmatprep.subr.mxu0 0.0
        %512 = vmatpush1.msra.mxu0 %v485
        %513 = vmatprep.subr.mxu0 0.0
        %514 = vmatpush1.msra.mxu0 %v486
        %515 = vmatprep.subr.mxu0 0.0
        %516 = vmatpush1.msra.mxu0 %v487
        %517 = vmatprep.subr.mxu0 0.0
        %518 = vmatpush1.msra.mxu0 %v488
        %519 = vmatprep.subr.mxu0 0.0
        %520 = vmatpush1.msra.mxu0 %v489
        %521 = vmatprep.subr.mxu0 0.0
        %522 = vmatpush1.msra.mxu0 %v490
        %523 = vmatprep.subr.mxu0 0.0
        %524 = vmatpush1.msra.mxu0 %v491
        %525 = vmatprep.subr.mxu0 0.0
        %526 = vmatpush1.msra.mxu0 0.0
        %527 = vmatprep.subr.mxu0 0.0
        %528 = vmatpush1.msra.mxu0 0.0
        %529 = vmatprep.subr.mxu0 0.0
        %530 = vmatpush1.msra.mxu0 0.0
        %531 = vmatprep.subr.mxu0 0.0
        %532 = vmatpush1.msra.mxu0 0.0
        %533 = vmatprep.subr.mxu0 0.0
        %534 = vmatpush1.msra.mxu0 0.0
        %535 = vmatprep.subr.mxu0 0.0
        %536 = vmatpush1.msra.mxu0 0.0
        %537 = vmatprep.subr.mxu0 0.0
        %538 = vmatpush1.msra.mxu0 0.0
        %539 = vmatprep.subr.mxu0 0.0
        %540 = vmatpush1.msra.mxu0 0.0
        %541 = vmatprep.subr.mxu0 0.0
        %542 = vmatpush1.msra.mxu0 0.0
        %543 = vmatprep.subr.mxu0 0.0
        %544 = vmatpush1.msra.mxu0 0.0
        %545 = vmatprep.subr.mxu0 0.0
        %546 = vmatpush1.msra.mxu0 0.0
        %547 = vmatprep.subr.mxu0 0.0
        %548 = vmatpush1.msra.mxu0 0.0
        %549 = vmatprep.subr.mxu0 0.0
        %550 = vmatpush1.msra.mxu0 0.0
        %551 = vmatprep.subr.mxu0 0.0
        %552 = vmatpush1.msra.mxu0 0.0
        %553 = vmatprep.subr.mxu0 0.0
        %554 = vmatpush1.msra.mxu0 0.0
        %555 = vmatprep.subr.mxu0 0.0
        %556 = vmatpush1.msra.mxu0 0.0
        %557 = vmatprep.subr.mxu0 0.0
        %558 = vmatpush1.msra.mxu0 0.0
        %559 = vmatprep.subr.mxu0 0.0
        %560 = vmatpush1.msra.mxu0 0.0
        %561 = vmatprep.subr.mxu0 0.0
        %562 = vmatpush1.msra.mxu0 0.0
        %563 = vmatprep.subr.mxu0 0.0
        %564 = vmatpush1.msra.mxu0 0.0
        %565 = vmatprep.subr.mxu0 0.0
        %566 = vmatpush1.msra.mxu0 0.0
        %567 = vmatprep.subr.mxu0 0.0
        %568 = vmatpush1.msra.mxu0 0.0
        %569 = vmatprep.subr.mxu0 0.0
        %570 = vmatpush1.msra.mxu0 0.0
        %571 = vmatprep.subr.mxu0 0.0
        %572 = vmatpush1.msra.mxu0 0.0
        %573 = vmatprep.mubr.f32.mxu0 0.0
        %574 = vmatmul.mubr.f32.gmra.mrb[0].mxu0 %v504
        %v575 = vpop.f32.mrb[0].mxu0
        %v576 = vadd.f32 %v495, %v575
        %v577 = vpop.f32.mrb[0].mxu0
        %578 = vmatprep.mubr.f32.mxu0 0.0
        %579 = vmatmul.mubr.f32.gmra.mrb[0].mxu0 %v507
        %v580 = vpop.f32.mrb[0].mxu0
        %v581 = vadd.f32 %v500, %v580
        %v582 = vpop.f32.mrb[0].mxu0
        %583 = vdwg.mxu0
        %v584 = vmax.f32 %v576, 0.0
        %v585 = vmax.f32 %v581, 0.0
        %587 = vset.pattern.permute.xlu0 0
        %588 = vperm.xlu0 %587, %v450
        %v589 = vpop.permute.xlu0 %588
        %592 = vset.pattern.permute.xlu0 0
        %593 = vperm.xlu0 %592, %v451
        %v594 = vpop.permute.xlu0 %593
        %vm596 = vcmask 261120
        %v598 = vsel %vm596, %v448, 0
        %v601 = vsel %vm596, %v449, 0
        %603 = vmatprep.subr.mxu0 0.0
        %604 = vmatpush1.msra.mxu0 %v480
        %605 = vmatprep.subr.mxu0 0.0
        %606 = vmatpush1.msra.mxu0 %v481
        %607 = vmatprep.subr.mxu0 0.0
        %608 = vmatpush1.msra.mxu0 %v482
        %609 = vmatprep.subr.mxu0 0.0
        %610 = vmatpush1.msra.mxu0 %v483
        %611 = vmatprep.subr.mxu0 0.0
        %612 = vmatpush1.msra.mxu0 0.0
        %613 = vmatprep.subr.mxu0 0.0
        %614 = vmatpush1.msra.mxu0 0.0
        %615 = vmatprep.subr.mxu0 0.0
        %616 = vmatpush1.msra.mxu0 0.0
        %617 = vmatprep.subr.mxu0 0.0
        %618 = vmatpush1.msra.mxu0 0.0
        %619 = vmatprep.subr.mxu0 0.0
        %620 = vmatpush1.msra.mxu0 0.0
        %621 = vmatprep.subr.mxu0 0.0
        %622 = vmatpush1.msra.mxu0 0.0
        %623 = vmatprep.subr.mxu0 0.0
        %624 = vmatpush1.msra.mxu0 0.0
        %625 = vmatprep.subr.mxu0 0.0
        %626 = vmatpush1.msra.mxu0 0.0
        %627 = vmatprep.subr.mxu0 0.0
        %628 = vmatpush1.msra.mxu0 0.0
        %629 = vmatprep.subr.mxu0 0.0
        %630 = vmatpush1.msra.mxu0 0.0
        %631 = vmatprep.subr.mxu0 0.0
        %632 = vmatpush1.msra.mxu0 0.0
        %633 = vmatprep.subr.mxu0 0.0
        %634 = vmatpush1.msra.mxu0 0.0
        %635 = vmatprep.subr.mxu0 0.0
        %636 = vmatpush1.msra.mxu0 0.0
        %637 = vmatprep.subr.mxu0 0.0
        %638 = vmatpush1.msra.mxu0 0.0
        %639 = vmatprep.subr.mxu0 0.0
        %640 = vmatpush1.msra.mxu0 0.0
        %641 = vmatprep.subr.mxu0 0.0
        %642 = vmatpush1.msra.mxu0 0.0
        %643 = vmatprep.subr.mxu0 0.0
        %644 = vmatpush1.msra.mxu0 0.0
        %645 = vmatprep.subr.mxu0 0.0
        %646 = vmatpush1.msra.mxu0 0.0
        %647 = vmatprep.subr.mxu0 0.0
        %648 = vmatpush1.msra.mxu0 0.0
        %649 = vmatprep.subr.mxu0 0.0
        %650 = vmatpush1.msra.mxu0 0.0
        %651 = vmatprep.subr.mxu0 0.0
        %652 = vmatpush1.msra.mxu0 0.0
        %653 = vmatprep.subr.mxu0 0.0
        %654 = vmatpush1.msra.mxu0 0.0
        %655 = vmatprep.subr.mxu0 0.0
        %656 = vmatpush1.msra.mxu0 0.0
        %657 = vmatprep.subr.mxu0 0.0
        %658 = vmatpush1.msra.mxu0 0.0
        %659 = vmatprep.subr.mxu0 0.0
        %660 = vmatpush1.msra.mxu0 0.0
        %661 = vmatprep.subr.mxu0 0.0
        %662 = vmatpush1.msra.mxu0 0.0
        %663 = vmatprep.subr.mxu0 0.0
        %664 = vmatpush1.msra.mxu0 0.0
        %665 = vmatprep.subr.mxu0 0.0
        %666 = vmatpush1.msra.mxu0 0.0
        %667 = vmatprep.mubr.f32.mxu0 0.0
        %668 = vmatmul.mubr.f32.gmra.mrb[0].mxu0 %v598
        %v669 = vpop.f32.mrb[0].mxu0
        %v670 = vadd.f32 %v589, %v669
        %v671 = vpop.f32.mrb[0].mxu0
        %672 = vmatprep.mubr.f32.mxu0 0.0
        %673 = vmatmul.mubr.f32.gmra.mrb[0].mxu0 %v601
        %v674 = vpop.f32.mrb[0].mxu0
        %v675 = vadd.f32 %v594, %v674
        %v676 = vpop.f32.mrb[0].mxu0
        %677 = vdwg.mxu0
        %v678 = vmax.f32 %v670, 0.0
        %v679 = vmax.f32 %v675, 0.0
        %vm680 = vcmask 130048
        %v681 = vsel %vm680, %v584, 0.0
        %v682 = vsel %vm680, %v585, 0.0
        %v683 = vadd.f32 %v681, %v682
        %v684 = vrot.slane %v683, 4
        %v685 = vadd.f32 %v683, %v684
        %v686 = vrot.slane %v685, 2
        %v687 = vadd.f32 %v685, %v686
        %v688 = vrot.slane %v687, 1
        %v689 = vadd.f32 %v687, %v688
        %v690 = vsel %vm680, %v584, -inf
        %v691 = vsel %vm680, %v585, -inf
        %v692 = vmax.f32 %v690, %v691
        %v693 = vrot.slane %v692, 4
        %v694 = vmax.f32 %v692, %v693
        %v695 = vrot.slane %v694, 2
        %v696 = vmax.f32 %v694, %v695
        %v697 = vrot.slane %v696, 1
        %v698 = vmax.f32 %v696, %v697
        %700 = vrot.lane.b32.xlu0 %v698, 16
        %v701 = vpop.permute.xlu0 %700
        %v703 = vsel %vm680, %v689, %v701
        %v705 = vsel %vm596, %v703, 0
        %707 = vmatprep.subr.mxu0 0.0
        %708 = vmatpush1.msra.mxu0 %v452
        %709 = vmatprep.subr.mxu0 0.0
        %710 = vmatpush1.msra.mxu0 %v453
        %711 = vmatprep.subr.mxu0 0.0
        %712 = vmatpush1.msra.mxu0 %v454
        %713 = vmatprep.subr.mxu0 0.0
        %714 = vmatpush1.msra.mxu0 %v455
        %715 = vmatprep.subr.mxu0 0.0
        %716 = vmatpush1.msra.mxu0 0.0
        %717 = vmatprep.subr.mxu0 0.0
        %718 = vmatpush1.msra.mxu0 0.0
        %719 = vmatprep.subr.mxu0 0.0
        %720 = vmatpush1.msra.mxu0 0.0
        %721 = vmatprep.subr.mxu0 0.0
        %722 = vmatpush1.msra.mxu0 0.0
        %723 = vmatprep.subr.mxu0 0.0
        %724 = vmatpush1.msra.mxu0 0.0
        %725 = vmatprep.subr.mxu0 0.0
        %726 = vmatpush1.msra.mxu0 0.0
        %727 = vmatprep.subr.mxu0 0.0
        %728 = vmatpush1.msra.mxu0 0.0
        %729 = vmatprep.subr.mxu0 0.0
        %730 = vmatpush1.msra.mxu0 0.0
        %731 = vmatprep.subr.mxu0 0.0
        %732 = vmatpush1.msra.mxu0 0.0
        %733 = vmatprep.subr.mxu0 0.0
        %734 = vmatpush1.msra.mxu0 0.0
        %735 = vmatprep.subr.mxu0 0.0
        %736 = vmatpush1.msra.mxu0 0.0
        %737 = vmatprep.subr.mxu0 0.0
        %738 = vmatpush1.msra.mxu0 0.0
        %739 = vmatprep.subr.mxu0 0.0
        %740 = vmatpush1.msra.mxu0 0.0
        %741 = vmatprep.subr.mxu0 0.0
        %742 = vmatpush1.msra.mxu0 0.0
        %743 = vmatprep.subr.mxu0 0.0
        %744 = vmatpush1.msra.mxu0 0.0
        %745 = vmatprep.subr.mxu0 0.0
        %746 = vmatpush1.msra.mxu0 0.0
        %747 = vmatprep.subr.mxu0 0.0
        %748 = vmatpush1.msra.mxu0 0.0
        %749 = vmatprep.subr.mxu0 0.0
        %750 = vmatpush1.msra.mxu0 0.0
        %751 = vmatprep.subr.mxu0 0.0
        %752 = vmatpush1.msra.mxu0 0.0
        %753 = vmatprep.subr.mxu0 0.0
        %754 = vmatpush1.msra.mxu0 0.0
        %755 = vmatprep.subr.mxu0 0.0
        %756 = vmatpush1.msra.mxu0 0.0
        %757 = vmatprep.subr.mxu0 0.0
        %758 = vmatpush1.msra.mxu0 0.0
        %759 = vmatprep.subr.mxu0 0.0
        %760 = vmatpush1.msra.mxu0 0.0
        %761 = vmatprep.subr.mxu0 0.0
        %762 = vmatpush1.msra.mxu0 0.0
        %763 = vmatprep.subr.mxu0 0.0
        %764 = vmatpush1.msra.mxu0 0.0
        %765 = vmatprep.subr.mxu0 0.0
        %766 = vmatpush1.msra.mxu0 0.0
        %767 = vmatprep.subr.mxu0 0.0
        %768 = vmatpush1.msra.mxu0 0.0
        %769 = vmatprep.subr.mxu0 0.0
        %770 = vmatpush1.msra.mxu0 0.0
        %771 = vmatprep.mubr.f32.mxu0 0.0
        %772 = vmatmul.mubr.f32.gmra.mrb[0].mxu0 %v705
        %v773 = vpop.f32.mrb[0].mxu0
        %v774 = vadd.f32 0.0, %v773
        %v775 = vpop.f32.mrb[0].mxu0
        %776 = vdwg.mxu0
        %v777 = vxor.u32 %v774, 2147483648
        %v778 = vmul.f32 %v777, 1.442695
        %v779 = vpow.pop %v778
        %v780 = vadd.f32 %v779, 1.0
        %v781 = vrcp.pop %v780
        %v782 = vmul.f32 1.0, %v781
        %v784 = vsel %vm680, %v584, 0
        %v787 = vsel %vm680, %v585, 0
        %v790 = vsel %vm680, %v782, 0
        %792 = vmatprep.subr.mxu0 %v457
        %793 = vmatpush1.msra.mxu0 %v456
        %794 = vmatprep.subr.mxu0 %v459
        %795 = vmatpush1.msra.mxu0 %v458
        %796 = vmatprep.subr.mxu0 0.0
        %797 = vmatpush1.msra.mxu0 0.0
        %798 = vmatprep.subr.mxu0 0.0
        %799 = vmatpush1.msra.mxu0 0.0
        %800 = vmatprep.subr.mxu0 0.0
        %801 = vmatpush1.msra.mxu0 0.0
        %802 = vmatprep.subr.mxu0 0.0
        %803 = vmatpush1.msra.mxu0 0.0
        %804 = vmatprep.subr.mxu0 0.0
        %805 = vmatpush1.msra.mxu0 0.0
        %806 = vmatprep.subr.mxu0 0.0
        %807 = vmatpush1.msra.mxu0 0.0
        %808 = vmatprep.subr.mxu0 0.0
        %809 = vmatpush1.msra.mxu0 0.0
        %810 = vmatprep.subr.mxu0 0.0
        %811 = vmatpush1.msra.mxu0 0.0
        %812 = vmatprep.subr.mxu0 0.0
        %813 = vmatpush1.msra.mxu0 0.0
        %814 = vmatprep.subr.mxu0 0.0
        %815 = vmatpush1.msra.mxu0 0.0
        %816 = vmatprep.subr.mxu0 0.0
        %817 = vmatpush1.msra.mxu0 0.0
        %818 = vmatprep.subr.mxu0 0.0
        %819 = vmatpush1.msra.mxu0 0.0
        %820 = vmatprep.subr.mxu0 0.0
        %821 = vmatpush1.msra.mxu0 0.0
        %822 = vmatprep.subr.mxu0 0.0
        %823 = vmatpush1.msra.mxu0 0.0
        %824 = vmatprep.subr.mxu0 0.0
        %825 = vmatpush1.msra.mxu0 0.0
        %826 = vmatprep.subr.mxu0 0.0
        %827 = vmatpush1.msra.mxu0 0.0
        %828 = vmatprep.subr.mxu0 0.0
        %829 = vmatpush1.msra.mxu0 0.0
        %830 = vmatprep.subr.mxu0 0.0
        %831 = vmatpush1.msra.mxu0 0.0
        %832 = vmatprep.subr.mxu0 0.0
        %833 = vmatpush1.msra.mxu0 0.0
        %834 = vmatprep.subr.mxu0 0.0
        %835 = vmatpush1.msra.mxu0 0.0
        %836 = vmatprep.subr.mxu0 0.0
        %837 = vmatpush1.msra.mxu0 0.0
        %838 = vmatprep.subr.mxu0 0.0
        %839 = vmatpush1.msra.mxu0 0.0
        %840 = vmatprep.subr.mxu0 0.0
        %841 = vmatpush1.msra.mxu0 0.0
        %842 = vmatprep.subr.mxu0 0.0
        %843 = vmatpush1.msra.mxu0 0.0
        %844 = vmatprep.subr.mxu0 0.0
        %845 = vmatpush1.msra.mxu0 0.0
        %846 = vmatprep.subr.mxu0 0.0
        %847 = vmatpush1.msra.mxu0 0.0
        %848 = vmatprep.subr.mxu0 0.0
        %849 = vmatpush1.msra.mxu0 0.0
        %850 = vmatprep.subr.mxu0 0.0
        %851 = vmatpush1.msra.mxu0 0.0
        %852 = vmatprep.subr.mxu0 0.0
        %853 = vmatpush1.msra.mxu0 0.0
        %854 = vmatprep.subr.mxu0 0.0
        %855 = vmatpush1.msra.mxu0 0.0
        %856 = vmatprep.mubr.f32.mxu0 0.0
        %857 = vmatmul.mubr.f32.gmra.mrb[0].mxu0 %v784
        %v858 = vpop.f32.mrb[0].mxu0
        %v859 = vadd.f32 0.0, %v858
        %v860 = vpop.f32.mrb[0].mxu0
        %v861 = vadd.f32 0.0, %v860
        %862 = vmatprep.mubr.f32.mxu0 0.0
        %863 = vmatmul.mubr.f32.gmra.mrb[0].mxu0 %v787
        %v864 = vpop.f32.mrb[0].mxu0
        %v865 = vadd.f32 0.0, %v864
        %v866 = vpop.f32.mrb[0].mxu0
        %v867 = vadd.f32 0.0, %v866
        %868 = vmatprep.mubr.f32.mxu0 0.0
        %869 = vmatmul.mubr.f32.gmra.mrb[0].mxu0 %v790
        %v870 = vpop.f32.mrb[0].mxu0
        %v871 = vadd.f32 0.0, %v870
        %v872 = vpop.f32.mrb[0].mxu0
        %v873 = vadd.f32 0.0, %v872
        %874 = vdwg.mxu0
        %v876 = vsel %vm502, %v678, 0
        %v879 = vsel %vm502, %v679, 0
        %881 = vmatprep.subr.mxu0 %v461
        %882 = vmatpush1.msra.mxu0 %v460
        %883 = vmatprep.subr.mxu0 %v463
        %884 = vmatpush1.msra.mxu0 %v462
        %885 = vmatprep.subr.mxu0 %v465
        %886 = vmatpush1.msra.mxu0 %v464
        %887 = vmatprep.subr.mxu0 %v467
        %888 = vmatpush1.msra.mxu0 %v466
        %889 = vmatprep.subr.mxu0 %v469
        %890 = vmatpush1.msra.mxu0 %v468
        %891 = vmatprep.subr.mxu0 %v471
        %892 = vmatpush1.msra.mxu0 %v470
        %893 = vmatprep.subr.mxu0 %v473
        %894 = vmatpush1.msra.mxu0 %v472
        %895 = vmatprep.subr.mxu0 %v475
        %896 = vmatpush1.msra.mxu0 %v474
        %897 = vmatprep.subr.mxu0 0.0
        %898 = vmatpush1.msra.mxu0 0.0
        %899 = vmatprep.subr.mxu0 0.0
        %900 = vmatpush1.msra.mxu0 0.0
        %901 = vmatprep.subr.mxu0 0.0
        %902 = vmatpush1.msra.mxu0 0.0
        %903 = vmatprep.subr.mxu0 0.0
        %904 = vmatpush1.msra.mxu0 0.0
        %905 = vmatprep.subr.mxu0 0.0
        %906 = vmatpush1.msra.mxu0 0.0
        %907 = vmatprep.subr.mxu0 0.0
        %908 = vmatpush1.msra.mxu0 0.0
        %909 = vmatprep.subr.mxu0 0.0
        %910 = vmatpush1.msra.mxu0 0.0
        %911 = vmatprep.subr.mxu0 0.0
        %912 = vmatpush1.msra.mxu0 0.0
        %913 = vmatprep.subr.mxu0 0.0
        %914 = vmatpush1.msra.mxu0 0.0
        %915 = vmatprep.subr.mxu0 0.0
        %916 = vmatpush1.msra.mxu0 0.0
        %917 = vmatprep.subr.mxu0 0.0
        %918 = vmatpush1.msra.mxu0 0.0
        %919 = vmatprep.subr.mxu0 0.0
        %920 = vmatpush1.msra.mxu0 0.0
        %921 = vmatprep.subr.mxu0 0.0
        %922 = vmatpush1.msra.mxu0 0.0
        %923 = vmatprep.subr.mxu0 0.0
        %924 = vmatpush1.msra.mxu0 0.0
        %925 = vmatprep.subr.mxu0 0.0
        %926 = vmatpush1.msra.mxu0 0.0
        %927 = vmatprep.subr.mxu0 0.0
        %928 = vmatpush1.msra.mxu0 0.0
        %929 = vmatprep.subr.mxu0 0.0
        %930 = vmatpush1.msra.mxu0 0.0
        %931 = vmatprep.subr.mxu0 0.0
        %932 = vmatpush1.msra.mxu0 0.0
        %933 = vmatprep.subr.mxu0 0.0
        %934 = vmatpush1.msra.mxu0 0.0
        %935 = vmatprep.subr.mxu0 0.0
        %936 = vmatpush1.msra.mxu0 0.0
        %937 = vmatprep.subr.mxu0 0.0
        %938 = vmatpush1.msra.mxu0 0.0
        %939 = vmatprep.subr.mxu0 0.0
        %940 = vmatpush1.msra.mxu0 0.0
        %941 = vmatprep.subr.mxu0 0.0
        %942 = vmatpush1.msra.mxu0 0.0
        %943 = vmatprep.subr.mxu0 0.0
        %944 = vmatpush1.msra.mxu0 0.0
        %945 = vmatprep.mubr.f32.mxu0 0.0
        %946 = vmatmul.mubr.f32.gmra.mrb[0].mxu0 %v876
        %v947 = vpop.f32.mrb[0].mxu0
        %v948 = vadd.f32 0.0, %v947
        %v949 = vpop.f32.mrb[0].mxu0
        %v950 = vadd.f32 0.0, %v949
        %951 = vmatprep.mubr.f32.mxu0 0.0
        %952 = vmatmul.mubr.f32.gmra.mrb[0].mxu0 %v879
        %v953 = vpop.f32.mrb[0].mxu0
        %v954 = vadd.f32 0.0, %v953
        %v955 = vpop.f32.mrb[0].mxu0
        %v956 = vadd.f32 0.0, %v955
        %957 = vdwg.mxu0
        %v958 = vstv %s441
        %v959 = vmul.f32 %v958, %v476
        %v960 = vmul.f32 %v958, %v477
        %v961 = vmul.f32 %v958, %v478
        %v962 = vmul.f32 %v958, %v479
        %v963 = vstv %s442
        %v964 = vmul.f32 %v963, %v859
        %v965 = vmul.f32 %v963, %v861
        %v966 = vmul.f32 %v963, %v865
        %v967 = vmul.f32 %v963, %v867
        %v968 = vadd.f32 %v959, %v964
        %v969 = vadd.f32 %v960, %v965
        %v970 = vadd.f32 %v961, %v966
        %v971 = vadd.f32 %v962, %v967
        %v972 = vstv %s443
        %v973 = vadd.f32 %v972, %v871
        %v974 = vadd.f32 %v972, %v873
        %v975 = vlaneseq
        %v976 = vshrl.u32 %v975, 7
        %v977 = vsub.s32 0, %v976
        %v978 = vrot.slane %v973, %v977
        %v979 = vlaneseq
        %v980 = vshrl.u32 %v979, 7
        %v981 = vsub.s32 0, %v980
        %v982 = vrot.slane %v974, %v981
        %v983 = vmul.f32 %v978, %v948
        %v984 = vmul.f32 %v982, %v950
        %v985 = vmul.f32 %v978, %v954
        %v986 = vmul.f32 %v982, %v956
        %v987 = vadd.f32 %v968, %v983
        %v988 = vadd.f32 %v969, %v984
        %v989 = vadd.f32 %v970, %v985
        %v990 = vadd.f32 %v971, %v986
        %991 = vst [vmem:[%s440] sm:$0xff] %v987
        %992 = vst [vmem:[%s440 + $0x8] sm:$0xff] %v988
        %993 = vst [vmem:[%s440 + $0x10] sm:$0xff] %v989
        %994 = vst [vmem:[%s440 + $0x18] sm:$0xff] %v990
        %p995 = scmp.lt.s32.totalorder %s23, 1
        %s996 = scalar_select %p995, %s23, 1
        %s997 = smul.addr %s996, 4
        %s998 = smul.addr %s997, 8
        %s999 = scalar_lea.vmem %s11, %s998
        // Predicated region
        $region69: #{cfc_forward.1} parent=63 // pred_check
          %p1000 = pneg %p287
        $region70: #{cfc_forward.1} parent=63 // pred_check_branch
          %1002 = sbr.rel (%p1000) target = $region72
        $region71: #{cfc_forward.1} parent=63 // pred_region
          _
        $region72: #{cfc_forward.1} parent=63 // pred_fallthru
          _
      $region64: #{cfc_forward.1} parent=5 // pred_fallthru
        _
      %p1003 = scmp.le.s32.totalorder 2, %s18
      // Predicated region
      $region73: #{cfc_forward.1} parent=5 // pred_check
        %p1004 = pneg %p1003
      $region74: #{cfc_forward.1} parent=5 // pred_check_branch
        %1006 = sbr.rel (%p1004) target = $region76
      $region75: #{cfc_forward.1} parent=5 // pred_region
        %s1007 = ssub.s32 %s18, 2
        // Predicated region
        $region77: #{cfc_forward.1} parent=75 // pred_check
          %p1008 = pneg %p293
        $region78: #{cfc_forward.1} parent=75 // pred_check_branch
          %1010 = sbr.rel (%p1008) target = $region80
        $region79: #{cfc_forward.1} parent=75 // pred_region
          %p1011 = scmp.lt.s32.totalorder %s24, 1
          %s1012 = scalar_select %p1011, %s24, 1
          %s1013 = smul.addr %s1012, 4
          %s1014 = smul.addr %s1013, 8
          %s1015 = scalar_lea.vmem %s11, %s1014
        $region80: #{cfc_forward.1} parent=75 // pred_fallthru
          _
      $region76: #{cfc_forward.1} parent=5 // pred_fallthru
        _
    $region6: #{cfc_forward.1} parent=1 // loop_footer
      %s22 = sadd.s32 1, %s18
    $region7: #{cfc_forward.1} parent=1 // loop_footer_branch
      %17 = sbr.rel target = $region3
    $region8: #{cfc_forward.1} parent=1 // loop_exit
      _
    %1016 = vsyncpa [#allocation3], 1
    %s1017 = scalar_lea.sflag [#allocation3], 1
    %1018 = vsyncpa %s1017, 1

</llo_original>
